<compile_context>
chip_gen: v6e
topology: v6e:2x2x1
jax: 0.10.0
libtpu: 0.0.40
codegen_flags: <defaults>
</compile_context>

<pallas_src>
import functools

import jax
import jax.numpy as jnp
from jax.experimental import pallas as pl
from jax.experimental.pallas import tpu as pltpu


def _round_up(x, m):
    return (x + m - 1) // m * m


def _pick_tile(dim, target):
    """Use `target` if it evenly tiles `dim`, else fall back to the full dim
    (covers the small demo shapes; real Gemma dims are multiples of 256/512)."""
    if dim <= target or dim % target != 0:
        return dim
    return target


def _rotate_half_matrix(D):
    """DxD +-1 permutation matrix: x @ R == rotate_half(x) (neox style)."""
    half = D // 2
    idx = jnp.arange(half)
    R = jnp.zeros((D, D), jnp.float32)
    R = R.at[idx + half, idx].set(-1.0)   # out[:, :half] = -x[:, half:]
    R = R.at[idx, idx + half].set(1.0)    # out[:, half:] =  x[:, :half]
    return R.astype(jnp.bfloat16)         # +-1/0 entries -> exact in bf16


# ----------------------------- Plain tiled matmul (o_proj) -----------------------------

def _matmul_kernel(x_ref, w_ref, o_ref, acc_ref):
    @pl.when(pl.program_id(2) == 0)
    def _init():
        acc_ref[...] = jnp.zeros(acc_ref.shape, jnp.float32)

    acc_ref[...] += jnp.dot(x_ref[...], w_ref[...],
                            preferred_element_type=jnp.float32)

    @pl.when(pl.program_id(2) == pl.num_programs(2) - 1)
    def _store():
        o_ref[...] = acc_ref[...].astype(o_ref.dtype)


def pallas_linear(x, w, *, tm=256, tn=256, tk=512, out_dtype=jnp.bfloat16):
    """x: [M, K] bf16, w: [K, N] bf16 -> [M, N] out_dtype (f32 accumulate)."""
    M, K = x.shape
    K2, N = w.shape
    assert K == K2
    tm = _pick_tile(M, tm)
    tn = _pick_tile(N, tn)
    tk = _pick_tile(K, tk)
    return pl.pallas_call(
        _matmul_kernel,
        out_shape=jax.ShapeDtypeStruct((M, N), out_dtype),
        grid=(M // tm, N // tn, K // tk),
        in_specs=[pl.BlockSpec((tm, tk), lambda i, j, k: (i, k)),
                  pl.BlockSpec((tk, tn), lambda i, j, k: (k, j))],
        out_specs=pl.BlockSpec((tm, tn), lambda i, j, k: (i, j)),
        scratch_shapes=[pltpu.VMEM((tm, tn), jnp.float32)],
        compiler_params=pltpu.CompilerParams(
            dimension_semantics=("parallel", "parallel", "arbitrary")),
    )(x, w)


# -------------------- Fused QKV projection + neox RoPE (+ q scaling) --------------------

def _qkv_rope_kernel(x_ref, w_ref, cos_ref, sin_ref, rot_ref, o_ref, acc_ref, *,
                     num_q_heads, num_rope_heads, scale):
    k_idx = pl.program_id(2)

    @pl.when(k_idx == 0)
    def _init():
        acc_ref[...] = jnp.zeros(acc_ref.shape, jnp.float32)

    acc_ref[...] += jnp.dot(x_ref[...], w_ref[...],
                            preferred_element_type=jnp.float32)

    last = k_idx == pl.num_programs(2) - 1
    h = pl.program_id(1)  # head-sized column block: [0, H) q, [H, H+KVH) k, rest v

    @pl.when(jnp.logical_and(last, h < num_rope_heads))
    def _store_rope():
        # Fold softmax scale into q columns only; rotate_half via the +-1
        # permutation matmul (exact in bf16), amortized once per output tile.
        x = acc_ref[...] * jnp.where(h < num_q_heads, scale, 1.0)
        x_rot = jnp.dot(x.astype(jnp.bfloat16), rot_ref[...],
                        preferred_element_type=jnp.float32)
        o_ref[...] = (x * cos_ref[...] + x_rot * sin_ref[...]).astype(o_ref.dtype)

    @pl.when(jnp.logical_and(last, h >= num_rope_heads))
    def _store_plain():
        o_ref[...] = acc_ref[...].astype(o_ref.dtype)


def pallas_qkv_proj_rope(x, w, cos, sin, rot, *, num_q_heads, num_kv_heads,
                         head_dim, scale, tm, tk=512):
    """x: [Tp, hidden] bf16, w: [hidden, (H+2KVH)*D] bf16, cos/sin: [Tp, D] f32,
    rot: [D, D] bf16 -> [Tp, (H+2KVH)*D] bf16 with RoPE applied to q/k heads and
    1/sqrt(D) folded into q."""
    M, K = x.shape
    K2, N = w.shape
    assert K == K2
    D = head_dim
    assert N == (num_q_heads + 2 * num_kv_heads) * D
    tk = _pick_tile(K, tk)
    kernel = functools.partial(
        _qkv_rope_kernel,
        num_q_heads=num_q_heads,
        num_rope_heads=num_q_heads + num_kv_heads,
        scale=scale)
    return pl.pallas_call(
        kernel,
        out_shape=jax.ShapeDtypeStruct((M, N), jnp.bfloat16),
        grid=(M // tm, N // D, K // tk),
        in_specs=[
            pl.BlockSpec((tm, tk), lambda i, h, k: (i, k)),   # activations
            pl.BlockSpec((tk, D), lambda i, h, k: (k, h)),    # one head of W
            pl.BlockSpec((tm, D), lambda i, h, k: (i, 0)),    # cos (resident per i)
            pl.BlockSpec((tm, D), lambda i, h, k: (i, 0)),    # sin (resident per i)
            pl.BlockSpec((D, D), lambda i, h, k: (0, 0)),     # rotate_half matrix
        ],
        out_specs=pl.BlockSpec((tm, D), lambda i, h, k: (i, h)),
        scratch_shapes=[pltpu.VMEM((tm, D), jnp.float32)],
        compiler_params=pltpu.CompilerParams(
            dimension_semantics=("parallel", "parallel", "arbitrary")),
    )(x, w, cos, sin, rot)


# ------------------------- Flash-style causal GQA attention -------------------------

def _flash_attn_kernel(q_ref, k_ref, v_ref, o_ref, m_ref, l_ref, acc_ref):
    tq, D = q_ref.shape
    tk = k_ref.shape[0]
    qi = pl.program_id(1)
    kv = pl.program_id(2)

    @pl.when(kv == 0)
    def _init():
        m_ref[...] = jnp.full(m_ref.shape, -jnp.inf, jnp.float32)
        l_ref[...] = jnp.zeros(l_ref.shape, jnp.float32)
        acc_ref[...] = jnp.zeros(acc_ref.shape, jnp.float32)

    def _scores():
        # q already carries the 1/sqrt(D) scale (folded in the QKV epilogue).
        return jax.lax.dot_general(q_ref[...], k_ref[...],
                                   (((1,), (1,)), ((), ())),
                                   preferred_element_type=jnp.float32)  # (tq, tk)

    def _update(s):
        m_prev = m_ref[...]
        m_new = jnp.maximum(m_prev, jnp.max(s, axis=-1, keepdims=True))
        alpha = jnp.exp(m_prev - m_new)
        p = jnp.exp(s - m_new)                                  # f32 softmax math
        l_ref[...] = alpha * l_ref[...] + jnp.sum(p, axis=-1, keepdims=True)
        acc_ref[...] = alpha * acc_ref[...] + jnp.dot(
            p.astype(jnp.bfloat16), v_ref[...],
            preferred_element_type=jnp.float32)
        m_ref[...] = m_new

    # Interior blocks (entirely below the causal diagonal): no mask needed.
    interior = (kv + 1) * tk <= qi * tq + 1

    @pl.when(interior)
    def _interior():
        _update(_scores())

    # Diagonal blocks: straddle the diagonal -> build and apply the causal mask.
    diagonal = jnp.logical_and(kv * tk < (qi + 1) * tq, jnp.logical_not(interior))

    @pl.when(diagonal)
    def _diag():
        s = _scores()
        row = qi * tq + jax.lax.broadcasted_iota(jnp.int32, (tq, tk), 0)
        col = kv * tk + jax.lax.broadcasted_iota(jnp.int32, (tq, tk), 1)
        _update(jnp.where(col <= row, s, -1e30))

    # Blocks entirely above the diagonal run neither branch (and their K/V tiles
    # are not DMA'd thanks to the clamped index_map below).

    @pl.when(kv == pl.num_programs(2) - 1)
    def _store():
        o_ref[...] = (acc_ref[...] *
                      pl.reciprocal(l_ref[...], approx=True)).astype(o_ref.dtype)


def pallas_flash_attention(qkv, *, num_heads, num_kv_heads, head_dim, seq_tile):
    """qkv: [Tp, (H+2KVH)*D] bf16 (q scaled+RoPE'd, k RoPE'd) -> [Tp, H*D] bf16."""
    Tp, N = qkv.shape
    H, KVH, D = num_heads, num_kv_heads, head_dim
    assert N == (H + 2 * KVH) * D
    group = H // KVH
    tq = tk = seq_tile

    def _kv_block(i, j):
        # Clamp so causally-skipped kv blocks alias the previous (resident)
        # block: no wasted K/V DMA above the diagonal.
        last_needed = ((i + 1) * tq - 1) // tk
        return jnp.minimum(j, last_needed)

    return pl.pallas_call(
        _flash_attn_kernel,
        out_shape=jax.ShapeDtypeStruct((Tp, H * D), jnp.bfloat16),
        grid=(H, Tp // tq, Tp // tk),
        in_specs=[
            pl.BlockSpec((tq, D), lambda h, i, j: (i, h)),                      # q head h
            pl.BlockSpec((tk, D), lambda h, i, j: (_kv_block(i, j), H + h // group)),        # GQA k
            pl.BlockSpec((tk, D), lambda h, i, j: (_kv_block(i, j), H + KVH + h // group)),   # GQA v
        ],
        out_specs=pl.BlockSpec((tq, D), lambda h, i, j: (i, h)),
        scratch_shapes=[
            pltpu.VMEM((tq, 1), jnp.float32),   # running max
            pltpu.VMEM((tq, 1), jnp.float32),   # running denom
            pltpu.VMEM((tq, D), jnp.float32),   # output accumulator
        ],
        compiler_params=pltpu.CompilerParams(
            dimension_semantics=("parallel", "parallel", "arbitrary")),
    )(qkv, qkv, qkv)


# ----------------------------- GemmaAttention module -----------------------------

class GemmaAttentionPallas:
    def __init__(self, hidden_size, num_heads, num_kv_heads, head_dim,
                 max_position_embeddings=8192, rope_theta=10000.0,
                 seq_block=256, key=None):
        assert head_dim % 128 == 0, "fused head-indexed layout needs head_dim % 128 == 0"
        assert num_heads % num_kv_heads == 0
        assert seq_block % 8 == 0
        self.hidden_size = hidden_size
        self.num_heads = num_heads
        self.num_kv_heads = num_kv_heads
        self.head_dim = head_dim
        self.q_size = num_heads * head_dim
        self.kv_size = num_kv_heads * head_dim
        self.scaling = head_dim ** (-0.5)
        self.rope_theta = rope_theta
        self.seq_block = seq_block

        key = jax.random.PRNGKey(0) if key is None else key
        k1, k2 = jax.random.split(key)
        qkv_out = (num_heads + 2 * num_kv_heads) * head_dim
        # Stored as [in, out] (equivalent to torch x @ W^T), kept in bf16 so the
        # matmul kernels feed the MXU natively and weight HBM traffic is halved.
        self.w_qkv = (0.02 * jax.random.normal(
            k1, (hidden_size, qkv_out), dtype=jnp.float32)).astype(jnp.bfloat16)
        self.w_o = (0.02 * jax.random.normal(
            k2, (num_heads * head_dim, hidden_size),
            dtype=jnp.float32)).astype(jnp.bfloat16)
        self.rot = _rotate_half_matrix(head_dim)

    def _rope_tables(self, positions):
        D = self.head_dim
        inv_freq = 1.0 / (self.rope_theta **
                          (jnp.arange(0, D, 2, dtype=jnp.float32) / D))
        freqs = positions.astype(jnp.float32)[:, None] * inv_freq[None, :]  # [T, D/2]
        cos = jnp.cos(freqs)
        sin = jnp.sin(freqs)
        # neox style: same cos/sin applied to both halves.
        return (jnp.concatenate([cos, cos], axis=-1),
                jnp.concatenate([sin, sin], axis=-1))

    def __call__(self, positions, hidden_states):
        T = hidden_states.shape[0]
        H, KVH, D = self.num_heads, self.num_kv_heads, self.head_dim

        # Row tile + padding (replaces the full-dim _pick_tile fallback on T).
        tile = self.seq_block if T >= self.seq_block else _round_up(T, 8)
        Tp = _round_up(T, tile)
        pad = Tp - T

        x = hidden_states.astype(jnp.bfloat16)
        if pad:
            x = jnp.pad(x, ((0, pad), (0, 0)))
            positions = jnp.pad(positions, (0, pad))

        cos, sin = self._rope_tables(positions)                 # [Tp, D] f32 each

        # Fused QKV projection + neox RoPE (+ q scaling), bf16 output, flat layout.
        qkv = pallas_qkv_proj_rope(
            x, self.w_qkv, cos, sin, self.rot,
            num_q_heads=H, num_kv_heads=KVH, head_dim=D,
            scale=self.scaling, tm=tile)                        # [Tp, (H+2KVH)*D] bf16

        # Flash-style causal GQA attention straight off the flat qkv buffer.
        attn = pallas_flash_attention(
            qkv, num_heads=H, num_kv_heads=KVH, head_dim=D,
            seq_tile=tile)                                      # [Tp, H*D] bf16

        # Output projection.
        out = pallas_linear(attn, self.w_o, tm=tile,
                            out_dtype=jnp.bfloat16)             # [Tp, hidden] bf16
        return out[:T] if pad else out


# ----------------------------- Pure-JAX reference (for validation) -----------------------------

def _reference(module, positions, hidden_states):
    H, KVH, D = module.num_heads, module.num_kv_heads, module.head_dim
    T = hidden_states.shape[0]
    f32 = jnp.float32
    x = hidden_states.astype(jnp.bfloat16).astype(f32)
    qkv = x @ module.w_qkv.astype(f32)
    q = qkv[:, :module.q_size].reshape(T, H, D)
    k = qkv[:, module.q_size:module.q_size + module.kv_size].reshape(T, KVH, D)
    v = qkv[:, module.q_size + module.kv_size:].reshape(T, KVH, D)
    cos, sin = module._rope_tables(positions)

    def rope(t):
        rot = jnp.concatenate([-t[..., D // 2:], t[..., :D // 2]], axis=-1)
        return t * cos[:, None, :] + rot * sin[:, None, :]

    q = (rope(q) * module.scaling).astype(jnp.bfloat16).astype(f32)
    k = rope(k).astype(jnp.bfloat16).astype(f32)
    v = v.astype(jnp.bfloat16).astype(f32)
    group = H // KVH
    k = jnp.repeat(k, group, axis=1)
    v = jnp.repeat(v, group, axis=1)
    s = jnp.einsum("thd,shd->hts", q, k)
    mask = jnp.tril(jnp.ones((T, T), dtype=bool))
    s = jnp.where(mask[None], s, -jnp.inf)
    p = jax.nn.softmax(s, axis=-1).astype(jnp.bfloat16).astype(f32)
    o = jnp.einsum("hts,shd->thd", p, v).reshape(T, H * D)
    o = o.astype(jnp.bfloat16).astype(f32)
    return (o @ module.w_o.astype(f32)).astype(jnp.bfloat16)


if __name__ == "__main__":
    # Small shapes consistent with the module (head_dim kept 128-aligned, as in
    # real Gemma where head_dim=256).  T=12 exercises padding; seq_block=8 gives
    # multiple q/kv blocks so the online softmax, causal skipping and clamped
    # kv index_map all get exercised.
    T = 12
    hidden_size = 128
    num_heads = 2
    num_kv_heads = 1
    head_dim = 128

    key = jax.random.PRNGKey(0)
    k_in, k_mod = jax.random.split(key)

    hidden_states = jax.random.normal(k_in, (T, hidden_size), dtype=jnp.float32)
    positions = jnp.arange(T, dtype=jnp.int32)

    module = GemmaAttentionPallas(hidden_size, num_heads, num_kv_heads, head_dim,
                                  seq_block=8, key=k_mod)

    out = module(positions, hidden_states)
    out = jax.block_until_ready(out)
    assert out.shape == (T, hidden_size)

    ref = _reference(module, positions, hidden_states)
    max_err = float(jnp.max(jnp.abs(out.astype(jnp.float32) -
                                    ref.astype(jnp.float32))))
    assert max_err < 1e-2, f"mismatch vs reference: max abs err = {max_err}"
    print("KERNEL_OK")
</pallas_src>

<mosaic_0001>
module attributes {stable_mosaic.version = 11 : i64} {
  func.func @_qkv_rope_kernel(%arg0: i32, %arg1: i32, %arg2: i32, %arg3: memref<8x128xbf16, #tpu.memory_space<vmem>>, %arg4: memref<128x128xbf16, #tpu.memory_space<vmem>>, %arg5: memref<8x128xf32, #tpu.memory_space<vmem>>, %arg6: memref<8x128xf32, #tpu.memory_space<vmem>>, %arg7: memref<128x128xbf16, #tpu.memory_space<vmem>>, %arg8: memref<8x128xbf16, #tpu.memory_space<vmem>>, %arg9: memref<8x128xf32, #tpu.memory_space<vmem>>) attributes {dimension_semantics = [#tpu.dimension_semantics<parallel>, #tpu.dimension_semantics<parallel>, #tpu.dimension_semantics<arbitrary>], iteration_bounds = array<i64: 2, 4, 1>, scalar_prefetch = 0 : i64, scratch_operands = 1 : i64, tpu.core_type = #tpu.core_type<tc>, window_params = [{transform_indices = @transform_0, window_bounds = array<i64: 8, 128>}, {transform_indices = @transform_1, window_bounds = array<i64: 128, 128>}, {transform_indices = @transform_2, window_bounds = array<i64: 8, 128>}, {transform_indices = @transform_3, window_bounds = array<i64: 8, 128>}, {pipeline_mode = #tpu.pipeline_mode<synchronous>, transform_indices = @transform_4, window_bounds = array<i64: 128, 128>}, {transform_indices = @transform_5, window_bounds = array<i64: 8, 128>}]} {
    %c0_i32 = arith.constant 0 : i32
    %0 = arith.cmpi eq, %arg2, %c0_i32 : i32
    %1 = arith.extui %0 : i1 to i32
    %c0_i32_0 = arith.constant 0 : i32
    %2 = arith.cmpi ne, %1, %c0_i32_0 : i32
    scf.if %2 {
      %cst_12 = arith.constant 0.000000e+00 : f32
      %18 = vector.broadcast %cst_12 : f32 to vector<8x128xf32>
      %c0_13 = arith.constant 0 : index
      %c0_14 = arith.constant 0 : index
      %19 = vector.load %arg9[%c0_13, %c0_14] : memref<8x128xf32, #tpu.memory_space<vmem>>, vector<8x128xf32>
      tpu.vector_store %arg9[%c0_13, %c0_14], %18 {strides = array<i32>} : memref<8x128xf32, #tpu.memory_space<vmem>>, vector<8x128xf32>,
    } else {
    }
    %c0 = arith.constant 0 : index
    %c0_1 = arith.constant 0 : index
    %3 = vector.load %arg9[%c0, %c0_1] : memref<8x128xf32, #tpu.memory_space<vmem>>, vector<8x128xf32>
    %c0_2 = arith.constant 0 : index
    %c0_3 = arith.constant 0 : index
    %4 = vector.load %arg3[%c0_2, %c0_3] : memref<8x128xbf16, #tpu.memory_space<vmem>>, vector<8x128xbf16>
    %c0_4 = arith.constant 0 : index
    %c0_5 = arith.constant 0 : index
    %5 = vector.load %arg4[%c0_4, %c0_5] : memref<128x128xbf16, #tpu.memory_space<vmem>>, vector<128x128xbf16>
    %cst = arith.constant dense<0.000000e+00> : vector<8x128xf32>
    %6 = tpu.matmul %4, %5, %cst {dimension_numbers = #tpu.dot_dimension_numbers<[1], [0], [0], [1], [0, 0, 1, 1], [], []>} : vector<8x128xbf16>, vector<128x128xbf16>, vector<8x128xf32> -> vector<8x128xf32>
    %7 = arith.addf %3, %6 : vector<8x128xf32>
    %c0_6 = arith.constant 0 : index
    %c0_7 = arith.constant 0 : index
    %8 = vector.load %arg9[%c0_6, %c0_7] : memref<8x128xf32, #tpu.memory_space<vmem>>, vector<8x128xf32>
    tpu.vector_store %arg9[%c0_6, %c0_7], %7 {strides = array<i32>} : memref<8x128xf32, #tpu.memory_space<vmem>>, vector<8x128xf32>,
    %c0_i32_8 = arith.constant 0 : i32
    %9 = arith.cmpi eq, %arg2, %c0_i32_8 : i32
    %c3_i32 = arith.constant 3 : i32
    %10 = arith.cmpi slt, %arg1, %c3_i32 : i32
    %11 = arith.andi %9, %10 : i1
    %12 = arith.extui %11 : i1 to i32
    %c0_i32_9 = arith.constant 0 : i32
    %13 = arith.cmpi ne, %12, %c0_i32_9 : i32
    scf.if %13 {
      %c0_12 = arith.constant 0 : index
      %c0_13 = arith.constant 0 : index
      %18 = vector.load %arg9[%c0_12, %c0_13] : memref<8x128xf32, #tpu.memory_space<vmem>>, vector<8x128xf32>
      %c2_i32 = arith.constant 2 : i32
      %19 = arith.cmpi slt, %arg1, %c2_i32 : i32
      %cst_14 = arith.constant 0.0883883461 : f32
      %cst_15 = arith.constant 1.000000e+00 : f32
      %20 = arith.select %19, %cst_14, %cst_15 : f32
      %21 = vector.broadcast %20 : f32 to vector<8x128xf32>
      %22 = arith.mulf %18, %21 : vector<8x128xf32>
      %23 = arith.truncf %22 : vector<8x128xf32> to vector<8x128xbf16>
      %c0_16 = arith.constant 0 : index
      %c0_17 = arith.constant 0 : index
      %24 = vector.load %arg7[%c0_16, %c0_17] : memref<128x128xbf16, #tpu.memory_space<vmem>>, vector<128x128xbf16>
      %cst_18 = arith.constant dense<0.000000e+00> : vector<8x128xf32>
      %25 = tpu.matmul %23, %24, %cst_18 {dimension_numbers = #tpu.dot_dimension_numbers<[1], [0], [0], [1], [0, 0, 1, 1], [], []>} : vector<8x128xbf16>, vector<128x128xbf16>, vector<8x128xf32> -> vector<8x128xf32>
      %c0_19 = arith.constant 0 : index
      %c0_20 = arith.constant 0 : index
      %26 = vector.load %arg5[%c0_19, %c0_20] : memref<8x128xf32, #tpu.memory_space<vmem>>, vector<8x128xf32>
      %27 = arith.mulf %22, %26 : vector<8x128xf32>
      %c0_21 = arith.constant 0 : index
      %c0_22 = arith.constant 0 : index
      %28 = vector.load %arg6[%c0_21, %c0_22] : memref<8x128xf32, #tpu.memory_space<vmem>>, vector<8x128xf32>
      %29 = arith.mulf %25, %28 : vector<8x128xf32>
      %30 = arith.addf %27, %29 : vector<8x128xf32>
      %31 = arith.truncf %30 : vector<8x128xf32> to vector<8x128xbf16>
      %c0_23 = arith.constant 0 : index
      %c0_24 = arith.constant 0 : index
      %32 = vector.load %arg8[%c0_23, %c0_24] : memref<8x128xbf16, #tpu.memory_space<vmem>>, vector<8x128xbf16>
      tpu.vector_store %arg8[%c0_23, %c0_24], %31 {strides = array<i32>} : memref<8x128xbf16, #tpu.memory_space<vmem>>, vector<8x128xbf16>,
    } else {
    }
    %c3_i32_10 = arith.constant 3 : i32
    %14 = arith.cmpi sge, %arg1, %c3_i32_10 : i32
    %15 = arith.andi %9, %14 : i1
    %16 = arith.extui %15 : i1 to i32
    %c0_i32_11 = arith.constant 0 : i32
    %17 = arith.cmpi ne, %16, %c0_i32_11 : i32
    scf.if %17 {
      %c0_12 = arith.constant 0 : index
      %c0_13 = arith.constant 0 : index
      %18 = vector.load %arg9[%c0_12, %c0_13] : memref<8x128xf32, #tpu.memory_space<vmem>>, vector<8x128xf32>
      %19 = arith.truncf %18 : vector<8x128xf32> to vector<8x128xbf16>
      %c0_14 = arith.constant 0 : index
      %c0_15 = arith.constant 0 : index
      %20 = vector.load %arg8[%c0_14, %c0_15] : memref<8x128xbf16, #tpu.memory_space<vmem>>, vector<8x128xbf16>
      tpu.vector_store %arg8[%c0_14, %c0_15], %19 {strides = array<i32>} : memref<8x128xbf16, #tpu.memory_space<vmem>>, vector<8x128xbf16>,
    } else {
    }
    return
  }
  func.func @transform_0(%arg0: i32, %arg1: i32, %arg2: i32) -> (i32, i32) {
    %c0_i32 = arith.constant 0 : i32
    return %arg0, %arg2 : i32, i32
  }
  func.func @transform_1(%arg0: i32, %arg1: i32, %arg2: i32) -> (i32, i32) {
    %c0_i32 = arith.constant 0 : i32
    return %arg2, %arg1 : i32, i32
  }
  func.func @transform_2(%arg0: i32, %arg1: i32, %arg2: i32) -> (i32, i32) {
    %c0_i32 = arith.constant 0 : i32
    %c0_i32_0 = arith.constant 0 : i32
    return %arg0, %c0_i32 : i32, i32
  }
  func.func @transform_3(%arg0: i32, %arg1: i32, %arg2: i32) -> (i32, i32) {
    %c0_i32 = arith.constant 0 : i32
    %c0_i32_0 = arith.constant 0 : i32
    return %arg0, %c0_i32 : i32, i32
  }
  func.func @transform_4(%arg0: i32, %arg1: i32, %arg2: i32) -> (i32, i32) {
    %c0_i32 = arith.constant 0 : i32
    %c0_i32_0 = arith.constant 0 : i32
    %c0_i32_1 = arith.constant 0 : i32
    return %c0_i32, %c0_i32_0 : i32, i32
  }
  func.func @transform_5(%arg0: i32, %arg1: i32, %arg2: i32) -> (i32, i32) {
    %c0_i32 = arith.constant 0 : i32
    return %arg0, %arg1 : i32, i32
  }
}

</mosaic_0001>

<llo_original>
// kernel: tpu_custom_call.1
$region0: #{tpu_custom_call.1}
  #allocation0 [shape = 'u32[]', space=smem, size = 0x4, offset = 0x4, fixed_abs, tag = 'smem constant byte address 0x4 - core index']
  #allocation1 [shape = 'u32[144,128]{1,0:T(1,128)}', space=vmem, size = 0x12000, scoped, tag = 'internal scratch']
  #allocation2 [shape = 'f32[8,128]{1,0:T(8,128)}', space=vmem, size = 0x1000, scoped, tag = 'scratch operand']
  %s0 = inlined_call_operand.hbm [shape: bf16[16,128], index: 0, kind: input, shape index: {}]
  %s1 = inlined_call_operand.hbm [shape: bf16[128,512], index: 1, kind: input, shape index: {}]
  %s2 = inlined_call_operand.hbm [shape: f32[16,128], index: 2, kind: input, shape index: {}]
  %s3 = inlined_call_operand.hbm [shape: f32[16,128], index: 3, kind: input, shape index: {}]
  %s4 = inlined_call_operand.hbm [shape: bf16[128,128], index: 4, kind: input, shape index: {}]
  %s5 = inlined_call_operand.hbm [shape: bf16[16,512], index: 5, kind: output, shape index: {}]
  %s6 = sld [smem:[#allocation0]]
  $region85: #{tpu_custom_call.1} parent=0
    _
  %s8 = ssub.s32 1, %s6
  %s9 = scalar_select 0, %s8, %s6
  $region1: #{tpu_custom_call.1} parent=0
    #allocation3 [shape = 'u8[4096]{0}', space=vmem, size = 0x1000, scoped, tag = 'input window, operand 0']
    #allocation4 [shape = 's32[2]{0}', space=sflag, size = 0x8, scoped, tag = 'scoped memory for tpu_custom_call.1']
    #allocation5 [shape = 's32[2]{0}', space=sflag, size = 0x8, scoped, tag = 'scoped memory for tpu_custom_call.1']
    #allocation6 [shape = 'u8[65536]{0}', space=vmem, size = 0x10000, scoped, tag = 'input window, operand 1']
    #allocation7 [shape = 's32[2]{0}', space=sflag, size = 0x8, scoped, tag = 'scoped memory for tpu_custom_call.1']
    #allocation8 [shape = 'u8[8192]{0}', space=vmem, size = 0x2000, scoped, tag = 'input window, operand 2']
    #allocation9 [shape = 'u8[8192]{0}', space=vmem, size = 0x2000, scoped, tag = 'input window, operand 3']
    #allocation10 [shape = 's32[2]{0}', space=sflag, size = 0x8, scoped, tag = 'scoped memory for tpu_custom_call.1']
    #allocation11 [shape = 'u8[32768]{0}', space=vmem, size = 0x8000, scoped, tag = 'input window, operand 4, single buffered']
    #allocation12 [shape = 'u8[4096]{0}', space=vmem, size = 0x1000, scoped, tag = 'output window, operand 0']
    %10 = vsyncpa [#allocation4], 0
    %s11 = scalar_lea.sflag [#allocation4], 1
    %12 = vsyncpa %s11, 0
    %13 = vsyncpa [#allocation7], 0
    %s14 = scalar_lea.sflag [#allocation7], 1
    %15 = vsyncpa %s14, 0
    %16 = vsyncpa [#allocation10], 0
    %s17 = scalar_lea.sflag [#allocation10], 1
    %18 = vsyncpa %s17, 0
    %19 = vsyncpa [#allocation5], 0
    %s20 = scalar_lea.sflag [#allocation5], 1
    %21 = vsyncpa %s20, 0
    loop: start=0, step=1, limit=10
    $region2: #{tpu_custom_call.1} parent=1 // loop_pre_header
      _
    $region3: #{tpu_custom_call.1} parent=1 // loop_header
      %s23 = sphi 0, %s27
      %p24 = scmp.ge.s32.totalorder %s23, 10
      %s30 = sphi 0, %s49
      %s31 = sphi 0, %s45
      %s32 = sphi 0, %s41
      %s33 = sphi 0, %s30
      %s34 = sphi 0, %s31
      %s35 = sphi 0, %s32
      %s36 = sphi 0, %s33
      %s37 = sphi 0, %s34
      %s38 = sphi 0, %s35
      %s54 = sphi 0, %s56
      %s57 = sphi 0, %s54
      %s58 = sphi 0, %s57
      %s74 = sphi 0, %s58
      %s82 = sphi 0, %s84
      %s85 = sphi 0, %s82
      %s86 = sphi 0, %s85
      %s102 = sphi 0, %s86
      %s108 = sphi 0, %s110
      %s111 = sphi 0, %s108
      %s112 = sphi 0, %s111
      %s128 = sphi 0, %s112
      %s134 = sphi 0, %s136
      %s137 = sphi 0, %s134
      %s138 = sphi 0, %s137
      %s154 = sphi 0, %s138
      %s158 = sphi 0, %s158
      %s160 = sphi 0, %s158
      %s161 = sphi 0, %s160
      %s175 = sphi 0, %s161
      %s183 = sphi 0, %s185
      %s186 = sphi 0, %s183
      %s187 = sphi 0, %s186
      %s203 = sphi 0, %s187
    $region4: #{tpu_custom_call.1} parent=1 // loop_header_branch
      %26 = sbr.rel (%p24) target = $region8
    $region5: #{tpu_custom_call.1} parent=1 // loop_body
      %s28 = ssub.s32 %s23, 1
      %s29 = ssub.s32 %s23, 2
      %s39 = sadd.s32 1, %s32
      %p40 = scmp.ge.s32.totalorder %s39, 1
      %s41 = scalar_select %p40, 0, %s39
      %s42 = sadd.s32 1, %s31
      %s43 = scalar_select %p40, %s42, %s31
      %p44 = scmp.ge.s32.totalorder %s43, 4
      %s45 = scalar_select %p44, 0, %s43
      %s46 = sadd.s32 1, %s30
      %s47 = scalar_select %p44, %s46, %s30
      %p48 = scmp.ge.s32.totalorder %s47, 2
      %s49 = scalar_select %p48, 0, %s47
      %s50 = ssub.s32 %s30, %s49
      %s51 = ssub.s32 %s32, %s41
      %s52 = sor.u32 %s50, %s51
      %p53 = scmp.eq.s32.totalorder %s52, 0
      %s55 = sadd.s32 %s54, 1
      %s56 = scalar_select %p53, %s54, %s55
      %p59 = pneg %p53
      %p60 = scmp.eq.s32.totalorder %s23, 7
      %p61 = por %p59, %p60
      %p62 = scmp.ne.s32.totalorder %s54, %s57
      %p63 = scmp.eq.s32.totalorder %s23, 0
      %p64 = por %p62, %p63
      %p65 = scmp.ne.s32.totalorder %s54, %s57
      %p66 = scmp.eq.s32.totalorder %s28, 7
      %p67 = por %p65, %p66
      %p68 = scmp.ne.s32.totalorder %s57, %s58
      %p69 = scmp.eq.s32.totalorder %s28, 0
      %p70 = por %p68, %p69
      %p71 = scmp.ne.s32.totalorder %s57, %s58
      %p72 = scmp.eq.s32.totalorder %s29, 7
      %p73 = por %p71, %p72
      %p75 = scmp.ne.s32.totalorder %s58, %s74
      %p76 = scmp.eq.s32.totalorder %s29, 0
      %p77 = por %p75, %p76
      %s78 = ssub.s32 %s32, %s41
      %s79 = ssub.s32 %s31, %s45
      %s80 = sor.u32 %s78, %s79
      %p81 = scmp.eq.s32.totalorder %s80, 0
      %s83 = sadd.s32 %s82, 1
      %s84 = scalar_select %p81, %s82, %s83
      %p87 = pneg %p81
      %p88 = scmp.eq.s32.totalorder %s23, 7
      %p89 = por %p87, %p88
      %p90 = scmp.ne.s32.totalorder %s82, %s85
      %p91 = scmp.eq.s32.totalorder %s23, 0
      %p92 = por %p90, %p91
      %p93 = scmp.ne.s32.totalorder %s82, %s85
      %p94 = scmp.eq.s32.totalorder %s28, 7
      %p95 = por %p93, %p94
      %p96 = scmp.ne.s32.totalorder %s85, %s86
      %p97 = scmp.eq.s32.totalorder %s28, 0
      %p98 = por %p96, %p97
      %p99 = scmp.ne.s32.totalorder %s85, %s86
      %p100 = scmp.eq.s32.totalorder %s29, 7
      %p101 = por %p99, %p100
      %p103 = scmp.ne.s32.totalorder %s86, %s102
      %p104 = scmp.eq.s32.totalorder %s29, 0
      %p105 = por %p103, %p104
      %s106 = ssub.s32 %s30, %s49
      %p107 = scmp.eq.s32.totalorder %s106, 0
      %s109 = sadd.s32 %s108, 1
      %s110 = scalar_select %p107, %s108, %s109
      %p113 = pneg %p107
      %p114 = scmp.eq.s32.totalorder %s23, 7
      %p115 = por %p113, %p114
      %p116 = scmp.ne.s32.totalorder %s108, %s111
      %p117 = scmp.eq.s32.totalorder %s23, 0
      %p118 = por %p116, %p117
      %p119 = scmp.ne.s32.totalorder %s108, %s111
      %p120 = scmp.eq.s32.totalorder %s28, 7
      %p121 = por %p119, %p120
      %p122 = scmp.ne.s32.totalorder %s111, %s112
      %p123 = scmp.eq.s32.totalorder %s28, 0
      %p124 = por %p122, %p123
      %p125 = scmp.ne.s32.totalorder %s111, %s112
      %p126 = scmp.eq.s32.totalorder %s29, 7
      %p127 = por %p125, %p126
      %p129 = scmp.ne.s32.totalorder %s112, %s128
      %p130 = scmp.eq.s32.totalorder %s29, 0
      %p131 = por %p129, %p130
      %s132 = ssub.s32 %s30, %s49
      %p133 = scmp.eq.s32.totalorder %s132, 0
      %s135 = sadd.s32 %s134, 1
      %s136 = scalar_select %p133, %s134, %s135
      %p139 = pneg %p133
      %p140 = scmp.eq.s32.totalorder %s23, 7
      %p141 = por %p139, %p140
      %p142 = scmp.ne.s32.totalorder %s134, %s137
      %p143 = scmp.eq.s32.totalorder %s23, 0
      %p144 = por %p142, %p143
      %p145 = scmp.ne.s32.totalorder %s134, %s137
      %p146 = scmp.eq.s32.totalorder %s28, 7
      %p147 = por %p145, %p146
      %p148 = scmp.ne.s32.totalorder %s137, %s138
      %p149 = scmp.eq.s32.totalorder %s28, 0
      %p150 = por %p148, %p149
      %p151 = scmp.ne.s32.totalorder %s137, %s138
      %p152 = scmp.eq.s32.totalorder %s29, 7
      %p153 = por %p151, %p152
      %p155 = scmp.ne.s32.totalorder %s138, %s154
      %p156 = scmp.eq.s32.totalorder %s29, 0
      %p157 = por %p155, %p156
      %s159 = sadd.s32 %s158, 1
      %p162 = scmp.eq.s32.totalorder %s23, 7
      %p163 = scmp.ne.s32.totalorder %s158, %s160
      %p164 = scmp.eq.s32.totalorder %s23, 0
      %p165 = por %p163, %p164
      %p166 = scmp.ne.s32.totalorder %s158, %s160
      %p167 = scmp.eq.s32.totalorder %s28, 7
      %p168 = por %p166, %p167
      %p169 = scmp.ne.s32.totalorder %s160, %s161
      %p170 = scmp.eq.s32.totalorder %s28, 0
      %p171 = por %p169, %p170
      %p172 = scmp.ne.s32.totalorder %s160, %s161
      %p173 = scmp.eq.s32.totalorder %s29, 7
      %p174 = por %p172, %p173
      %p176 = scmp.ne.s32.totalorder %s161, %s175
      %p177 = scmp.eq.s32.totalorder %s29, 0
      %p178 = por %p176, %p177
      %s179 = ssub.s32 %s30, %s49
      %s180 = ssub.s32 %s31, %s45
      %s181 = sor.u32 %s179, %s180
      %p182 = scmp.eq.s32.totalorder %s181, 0
      %s184 = sadd.s32 %s183, 1
      %s185 = scalar_select %p182, %s183, %s184
      %p188 = pneg %p182
      %p189 = scmp.eq.s32.totalorder %s23, 7
      %p190 = por %p188, %p189
      %p191 = scmp.ne.s32.totalorder %s183, %s186
      %p192 = scmp.eq.s32.totalorder %s23, 0
      %p193 = por %p191, %p192
      %p194 = scmp.ne.s32.totalorder %s183, %s186
      %p195 = scmp.eq.s32.totalorder %s28, 7
      %p196 = por %p194, %p195
      %p197 = scmp.ne.s32.totalorder %s186, %s187
      %p198 = scmp.eq.s32.totalorder %s28, 0
      %p199 = por %p197, %p198
      %p200 = scmp.ne.s32.totalorder %s186, %s187
      %p201 = scmp.eq.s32.totalorder %s29, 7
      %p202 = por %p200, %p201
      %p204 = scmp.ne.s32.totalorder %s187, %s203
      %p205 = scmp.eq.s32.totalorder %s29, 0
      %p206 = por %p204, %p205
      %p207 = scmp.le.s32.totalorder 1, %s23
      %p208 = scmp.lt.s32.totalorder %s23, 9
      %p209 = pnand %p207, %p208
      %p210 = pneg %p209
      // Predicated region
      $region9: #{tpu_custom_call.1} parent=5 // pred_check
        _
      $region10: #{tpu_custom_call.1} parent=5 // pred_check_branch
        %212 = sbr.rel (%p209) target = $region12
      $region11: #{tpu_custom_call.1} parent=5 // pred_region
        %s213 = ssub.s32 %s23, 1
        // Predicated region
        $region13: #{tpu_custom_call.1} parent=11 // pred_check
          %p214 = pneg %p171
        $region14: #{tpu_custom_call.1} parent=11 // pred_check_branch
          %216 = sbr.rel (%p214) target = $region16
        $region15: #{tpu_custom_call.1} parent=11 // pred_region
          %s218 = ssub.s32 1024, 1024
          %219 = vsyncadd [#allocation10], %s218
          %s220 = sshll.u32 [#allocation11], 4
          %s221 = int_to_ptr.vmem [resolvable:$true] %s220
          %226 = dma.hbm_to_vmem [thread:$0]  %s4, 1024, %s221, [#allocation10], 64, 64, 4
        $region16: #{tpu_custom_call.1} parent=11 // pred_fallthru
          _
      $region12: #{tpu_custom_call.1} parent=5 // pred_fallthru
        _
      %p227 = scmp.lt.s32.totalorder %s23, 8
      // Predicated region
      $region17: #{tpu_custom_call.1} parent=5 // pred_check
        %p228 = pneg %p227
      $region18: #{tpu_custom_call.1} parent=5 // pred_check_branch
        %230 = sbr.rel (%p228) target = $region20
      $region19: #{tpu_custom_call.1} parent=5 // pred_region
        // Predicated region
        $region21: #{tpu_custom_call.1} parent=19 // pred_check
          %p231 = pneg %p64
        $region22: #{tpu_custom_call.1} parent=19 // pred_check_branch
          %233 = sbr.rel (%p231) target = $region24
        $region23: #{tpu_custom_call.1} parent=19 // pred_region
          %s234 = sand.u32 %s54, 1
          %s235 = scalar_lea.sflag [#allocation4], %s234
          %s236 = sand.u32 %s54, 1
          %s237 = smul.addr %s236, 4
          %s238 = scalar_lea.vmem [#allocation3], %s237
          %s240 = ssub.s32 64, 64
          %241 = vsyncadd %s235, %s240
          %s242 = sadd.s32 %s32, %s30
          %s243 = smul.addr %s242, 64
          %s244 = scalar_lea.hbm %s0, %s243
          %s246 = sshll.u32 %s238, 4
          %s247 = int_to_ptr.vmem [resolvable:$true] %s246
          %249 = dma.hbm_to_vmem [thread:$0]  %s244, 64, %s247, %s235
        $region24: #{tpu_custom_call.1} parent=19 // pred_fallthru
          _
        // Predicated region
        $region25: #{tpu_custom_call.1} parent=19 // pred_check
          %p250 = pneg %p92
        $region26: #{tpu_custom_call.1} parent=19 // pred_check_branch
          %252 = sbr.rel (%p250) target = $region28
        $region27: #{tpu_custom_call.1} parent=19 // pred_region
          %s253 = sand.u32 %s23, 1
          %s254 = scalar_lea.sflag [#allocation7], %s253
          %s255 = sand.u32 %s82, 1
          %s256 = smul.addr %s255, 64
          %s257 = scalar_lea.vmem [#allocation6], %s256
          %s258 = smul.u32 16, %s32
          %s260 = ssub.s32 1024, 1024
          %261 = vsyncadd %s254, %s260
          %s262 = smul.addr %s258, 4
          %s263 = sadd.s32 %s31, %s262
          %s264 = smul.addr %s263, 64
          %s265 = scalar_lea.hbm %s1, %s264
          %s266 = sshll.u32 %s257, 4
          %s267 = int_to_ptr.vmem [resolvable:$true] %s266
          %272 = dma.hbm_to_vmem [thread:$0]  %s265, 1024, %s267, %s254, 256, 64, 4
        $region28: #{tpu_custom_call.1} parent=19 // pred_fallthru
          _
        // Predicated region
        $region29: #{tpu_custom_call.1} parent=19 // pred_check
          %p273 = pneg %p118
        $region30: #{tpu_custom_call.1} parent=19 // pred_check_branch
          %275 = sbr.rel (%p273) target = $region32
        $region31: #{tpu_custom_call.1} parent=19 // pred_region
          %s276 = sand.u32 %s23, 1
          %s277 = scalar_lea.sflag [#allocation7], %s276
          %s278 = sand.u32 %s108, 1
          %s279 = smul.addr %s278, 8
          %s280 = scalar_lea.vmem [#allocation8], %s279
          %s282 = ssub.s32 128, 128
          %283 = vsyncadd %s277, %s282
          %s284 = smul.addr %s30, 128
          %s285 = scalar_lea.hbm %s2, %s284
          %s287 = sshll.u32 %s280, 4
          %s288 = int_to_ptr.vmem [resolvable:$true] %s287
          %290 = dma.hbm_to_vmem [thread:$0]  %s285, 128, %s288, %s277
        $region32: #{tpu_custom_call.1} parent=19 // pred_fallthru
          _
        // Predicated region
        $region33: #{tpu_custom_call.1} parent=19 // pred_check
          %p291 = pneg %p144
        $region34: #{tpu_custom_call.1} parent=19 // pred_check_branch
          %293 = sbr.rel (%p291) target = $region36
        $region35: #{tpu_custom_call.1} parent=19 // pred_region
          %s294 = sand.u32 %s23, 1
          %s295 = scalar_lea.sflag [#allocation10], %s294
          %s296 = sand.u32 %s134, 1
          %s297 = smul.addr %s296, 8
          %s298 = scalar_lea.vmem [#allocation9], %s297
          %s300 = ssub.s32 128, 128
          %301 = vsyncadd %s295, %s300
          %s302 = smul.addr %s30, 128
          %s303 = scalar_lea.hbm %s3, %s302
          %s305 = sshll.u32 %s298, 4
          %s306 = int_to_ptr.vmem [resolvable:$true] %s305
          %308 = dma.hbm_to_vmem [thread:$0]  %s303, 128, %s306, %s295
        $region36: #{tpu_custom_call.1} parent=19 // pred_fallthru
          _
      $region20: #{tpu_custom_call.1} parent=5 // pred_fallthru
        _
      %p309 = scmp.le.s32.totalorder 1, %s23
      %p310 = scmp.lt.s32.totalorder %s23, 9
      %p311 = pnand %p309, %p310
      %p312 = pneg %p311
      // Predicated region
      $region37: #{tpu_custom_call.1} parent=5 // pred_check
        _
      $region38: #{tpu_custom_call.1} parent=5 // pred_check_branch
        %314 = sbr.rel (%p311) target = $region40
      $region39: #{tpu_custom_call.1} parent=5 // pred_region
        %s315 = ssub.s32 %s23, 1
        %s316 = sand.u32 %s57, 1
        %s317 = scalar_lea.sflag [#allocation4], %s316
        %s318 = sand.u32 %s57, 1
        %s319 = smul.addr %s318, 4
        %s320 = scalar_lea.vmem [#allocation3], %s319
        // Predicated region
        $region41: #{tpu_custom_call.1} parent=39 // pred_check
          %p321 = pneg %p70
        $region42: #{tpu_custom_call.1} parent=39 // pred_check_branch
          %323 = sbr.rel (%p321) target = $region44
        $region43: #{tpu_custom_call.1} parent=39 // pred_region
          %324 = dma.done %s317, 64
        $region44: #{tpu_custom_call.1} parent=39 // pred_fallthru
          _
        %s325 = sand.u32 %s28, 1
        %s326 = scalar_lea.sflag [#allocation7], %s325
        %s327 = sand.u32 %s85, 1
        %s328 = smul.addr %s327, 64
        %s329 = scalar_lea.vmem [#allocation6], %s328
        // Predicated region
        $region45: #{tpu_custom_call.1} parent=39 // pred_check
          %p330 = pneg %p98
        $region46: #{tpu_custom_call.1} parent=39 // pred_check_branch
          %332 = sbr.rel (%p330) target = $region48
        $region47: #{tpu_custom_call.1} parent=39 // pred_region
          %333 = dma.done %s326, 1024
        $region48: #{tpu_custom_call.1} parent=39 // pred_fallthru
          _
        %s334 = sand.u32 %s28, 1
        %s335 = scalar_lea.sflag [#allocation7], %s334
        %s336 = sand.u32 %s111, 1
        %s337 = smul.addr %s336, 8
        %s338 = scalar_lea.vmem [#allocation8], %s337
        // Predicated region
        $region49: #{tpu_custom_call.1} parent=39 // pred_check
          %p339 = pneg %p124
        $region50: #{tpu_custom_call.1} parent=39 // pred_check_branch
          %341 = sbr.rel (%p339) target = $region52
        $region51: #{tpu_custom_call.1} parent=39 // pred_region
          %342 = dma.done %s335, 128
        $region52: #{tpu_custom_call.1} parent=39 // pred_fallthru
          _
        %s343 = sand.u32 %s28, 1
        %s344 = scalar_lea.sflag [#allocation10], %s343
        %s345 = sand.u32 %s137, 1
        %s346 = smul.addr %s345, 8
        %s347 = scalar_lea.vmem [#allocation9], %s346
        // Predicated region
        $region53: #{tpu_custom_call.1} parent=39 // pred_check
          %p348 = pneg %p150
        $region54: #{tpu_custom_call.1} parent=39 // pred_check_branch
          %350 = sbr.rel (%p348) target = $region56
        $region55: #{tpu_custom_call.1} parent=39 // pred_region
          %351 = dma.done %s344, 128
        $region56: #{tpu_custom_call.1} parent=39 // pred_fallthru
          _
        // Predicated region
        $region57: #{tpu_custom_call.1} parent=39 // pred_check
          %p352 = pneg %p171
        $region58: #{tpu_custom_call.1} parent=39 // pred_check_branch
          %354 = sbr.rel (%p352) target = $region60
        $region59: #{tpu_custom_call.1} parent=39 // pred_region
          %355 = dma.done [#allocation10], 1024
        $region60: #{tpu_custom_call.1} parent=39 // pred_fallthru
          _
        %s356 = sand.u32 %s57, 1
        %s357 = scalar_lea.sflag [#allocation4], %s356
        %s358 = sand.u32 %s57, 1
        %s359 = smul.addr %s358, 4
        %s360 = scalar_lea.vmem [#allocation3], %s359
        %p361 = pneg %p70
        %p362 = pneg %p67
        %s363 = sand.u32 %s28, 1
        %s364 = scalar_lea.sflag [#allocation7], %s363
        %s365 = sand.u32 %s85, 1
        %s366 = smul.addr %s365, 64
        %s367 = scalar_lea.vmem [#allocation6], %s366
        %p368 = pneg %p98
        %p369 = pneg %p95
        %s370 = sand.u32 %s28, 1
        %s371 = scalar_lea.sflag [#allocation7], %s370
        %s372 = sand.u32 %s111, 1
        %s373 = smul.addr %s372, 8
        %s374 = scalar_lea.vmem [#allocation8], %s373
        %p375 = pneg %p124
        %p376 = pneg %p121
        %s377 = sand.u32 %s28, 1
        %s378 = scalar_lea.sflag [#allocation10], %s377
        %s379 = sand.u32 %s137, 1
        %s380 = smul.addr %s379, 8
        %s381 = scalar_lea.vmem [#allocation9], %s380
        %p382 = pneg %p150
        %p383 = pneg %p147
        %p384 = pneg %p171
        %p385 = pneg %p168
        %p386 = pneg %p199
        %p387 = pneg %p196
        %s388 = sand.u32 %s186, 1
        %s389 = scalar_lea.sflag [#allocation5], %s388
        %s390 = sand.u32 %s186, 1
        %s391 = smul.addr %s390, 4
        %s392 = scalar_lea.vmem [#allocation12], %s391
        %s393 = smul.u32 16, %s35
        %p395 = scmp.eq.s32.totalorder %s35, 0
        // Predicated region
        $region61: #{tpu_custom_call.1} parent=39 // pred_check
          %p396 = pneg %p395
        $region62: #{tpu_custom_call.1} parent=39 // pred_check_branch
          %398 = sbr.rel (%p396) target = $region64
        $region63: #{tpu_custom_call.1} parent=39 // pred_region
          %399 = vst [vmem:[#allocation2] sm:$0xff] 0.0
        $region64: #{tpu_custom_call.1} parent=39 // pred_fallthru
          _
        %v400 = vld [vmem:[#allocation2] sm:$0xff]
        %v401 = vld [vmem:[%s320] sm:$0xf]
        %v402 = vld [vmem:[%s329] sm:$0xf]
        %v403 = vld [vmem:[%s329 + $0x4] sm:$0xf]
        %v404 = vld [vmem:[%s329 + $0x8] sm:$0xf]
        %v405 = vld [vmem:[%s329 + $0xc] sm:$0xf]
        %v406 = vld [vmem:[%s329 + $0x10] sm:$0xf]
        %v407 = vld [vmem:[%s329 + $0x14] sm:$0xf]
        %v408 = vld [vmem:[%s329 + $0x18] sm:$0xf]
        %v409 = vld [vmem:[%s329 + $0x1c] sm:$0xf]
        %v410 = vld [vmem:[%s329 + $0x20] sm:$0xf]
        %v411 = vld [vmem:[%s329 + $0x24] sm:$0xf]
        %v412 = vld [vmem:[%s329 + $0x28] sm:$0xf]
        %v413 = vld [vmem:[%s329 + $0x2c] sm:$0xf]
        %v414 = vld [vmem:[%s329 + $0x30] sm:$0xf]
        %v415 = vld [vmem:[%s329 + $0x34] sm:$0xf]
        %v416 = vld [vmem:[%s329 + $0x38] sm:$0xf]
        %v417 = vld [vmem:[%s329 + $0x3c] sm:$0xf]
        %v434 = vunpack.c.l.b16 %v402
        %v435 = vunpack.c.l.b16 %v403
        %v436 = vunpack.c.l.b16 %v404
        %v437 = vunpack.c.l.b16 %v405
        %v438 = vunpack.c.l.b16 %v406
        %v439 = vunpack.c.l.b16 %v407
        %v440 = vunpack.c.l.b16 %v408
        %v441 = vunpack.c.l.b16 %v409
        %v442 = vunpack.c.l.b16 %v410
        %v443 = vunpack.c.l.b16 %v411
        %v444 = vunpack.c.l.b16 %v412
        %v445 = vunpack.c.l.b16 %v413
        %v446 = vunpack.c.l.b16 %v414
        %v447 = vunpack.c.l.b16 %v415
        %v448 = vunpack.c.l.b16 %v416
        %v449 = vunpack.c.l.b16 %v417
        %v450 = vpack.c.b16 %v435, %v434
        %v451 = vpack.c.b16 %v437, %v436
        %v452 = vpack.c.b16 %v439, %v438
        %v453 = vpack.c.b16 %v441, %v440
        %v454 = vpack.c.b16 %v443, %v442
        %v455 = vpack.c.b16 %v445, %v444
        %v456 = vpack.c.b16 %v447, %v446
        %v457 = vpack.c.b16 %v449, %v448
        %466 = vmatprep.subr.bf16.mxu0 0
        %467 = vmatpush1.bf16.msra.mxu0 %v457
        %468 = vmatprep.subr.bf16.mxu0 0
        %469 = vmatpush1.bf16.msra.mxu0 %v456
        %470 = vmatprep.subr.bf16.mxu0 0
        %471 = vmatpush1.bf16.msra.mxu0 %v455
        %472 = vmatprep.subr.bf16.mxu0 0
        %473 = vmatpush1.bf16.msra.mxu0 %v454
        %474 = vmatprep.subr.bf16.mxu0 0
        %475 = vmatpush1.bf16.msra.mxu0 %v453
        %476 = vmatprep.subr.bf16.mxu0 0
        %477 = vmatpush1.bf16.msra.mxu0 %v452
        %478 = vmatprep.subr.bf16.mxu0 0
        %479 = vmatpush1.bf16.msra.mxu0 %v451
        %480 = vmatprep.subr.bf16.mxu0 0
        %481 = vmatpush1.bf16.msra.mxu0 %v450
        %482 = vmatprep.subr.bf16.mxu0 0
        %483 = vmatpush2.bf16.msra.mxu0 0
        %484 = vmatprep.subr.bf16.mxu0 0
        %485 = vmatpush2.bf16.msra.mxu0 0
        %486 = vmatprep.subr.bf16.mxu0 0
        %487 = vmatpush2.bf16.msra.mxu0 0
        %488 = vmatprep.subr.bf16.mxu0 0
        %489 = vmatpush2.bf16.msra.mxu0 0
        %490 = vmatprep.subr.bf16.mxu0 0
        %491 = vmatpush2.bf16.msra.mxu0 0
        %492 = vmatprep.subr.bf16.mxu0 0
        %493 = vmatpush2.bf16.msra.mxu0 0
        %494 = vmatprep.subr.bf16.mxu0 0
        %495 = vmatpush2.bf16.msra.mxu0 0
        %496 = vmatprep.subr.bf16.mxu0 0
        %497 = vmatpush2.bf16.msra.mxu0 0
        %498 = vmatprep.mubr.bf16.mxu0 0
        %499 = vmatmul.mubr.bf16.gmra.mxu0 %v401
        %v500 = vpop.f32.mrf.mxu0
        %v501 = vadd.f32 0.0, %v500
        %v502 = vpop.f32.mrf.mxu0
        %v503 = vpop.f32.mrf.mxu0
        %v504 = vpop.f32.mrf.mxu0
        %505 = vdwg.mxu0
        %v506 = vadd.f32 %v400, %v501
        %507 = vst [vmem:[#allocation2] sm:$0xff] %v506
        %p508 = scmp.lt.s32.totalorder %s34, 3
        %p509 = pnand %p395, %p508
        %p510 = pneg %p509
        // Predicated region
        $region65: #{tpu_custom_call.1} parent=39 // pred_check
          _
        $region66: #{tpu_custom_call.1} parent=39 // pred_check_branch
          %512 = sbr.rel (%p509) target = $region68
        $region67: #{tpu_custom_call.1} parent=39 // pred_region
          %v513 = vld [vmem:[#allocation2] sm:$0xff]
          %p514 = scmp.lt.s32.totalorder %s34, 2
          %s515 = scalar_select %p514, 0.088388346, 1.0
          %v516 = vstv %s515
          %v517 = vmul.f32 %v513, %v516
          %v518 = vpack.c.bf16 %v517, %v517
          %v519 = vld [vmem:[#allocation11] sm:$0xf]
          %v520 = vld [vmem:[#allocation11 + $0x4] sm:$0xf]
          %v521 = vld [vmem:[#allocation11 + $0x8] sm:$0xf]
          %v522 = vld [vmem:[#allocation11 + $0xc] sm:$0xf]
          %v523 = vld [vmem:[#allocation11 + $0x10] sm:$0xf]
          %v524 = vld [vmem:[#allocation11 + $0x14] sm:$0xf]
          %v525 = vld [vmem:[#allocation11 + $0x18] sm:$0xf]
          %v526 = vld [vmem:[#allocation11 + $0x1c] sm:$0xf]
          %v527 = vld [vmem:[#allocation11 + $0x20] sm:$0xf]
          %v528 = vld [vmem:[#allocation11 + $0x24] sm:$0xf]
          %v529 = vld [vmem:[#allocation11 + $0x28] sm:$0xf]
          %v530 = vld [vmem:[#allocation11 + $0x2c] sm:$0xf]
          %v531 = vld [vmem:[#allocation11 + $0x30] sm:$0xf]
          %v532 = vld [vmem:[#allocation11 + $0x34] sm:$0xf]
          %v533 = vld [vmem:[#allocation11 + $0x38] sm:$0xf]
          %v534 = vld [vmem:[#allocation11 + $0x3c] sm:$0xf]
          %v551 = vunpack.c.l.b16 %v519
          %v552 = vunpack.c.l.b16 %v520
          %v553 = vunpack.c.l.b16 %v521
          %v554 = vunpack.c.l.b16 %v522
          %v555 = vunpack.c.l.b16 %v523
          %v556 = vunpack.c.l.b16 %v524
          %v557 = vunpack.c.l.b16 %v525
          %v558 = vunpack.c.l.b16 %v526
          %v559 = vunpack.c.l.b16 %v527
          %v560 = vunpack.c.l.b16 %v528
          %v561 = vunpack.c.l.b16 %v529
          %v562 = vunpack.c.l.b16 %v530
          %v563 = vunpack.c.l.b16 %v531
          %v564 = vunpack.c.l.b16 %v532
          %v565 = vunpack.c.l.b16 %v533
          %v566 = vunpack.c.l.b16 %v534
          %v567 = vpack.c.b16 %v552, %v551
          %v568 = vpack.c.b16 %v554, %v553
          %v569 = vpack.c.b16 %v556, %v555
          %v570 = vpack.c.b16 %v558, %v557
          %v571 = vpack.c.b16 %v560, %v559
          %v572 = vpack.c.b16 %v562, %v561
          %v573 = vpack.c.b16 %v564, %v563
          %v574 = vpack.c.b16 %v566, %v565
          %583 = vmatprep.subr.bf16.mxu0 0
          %584 = vmatpush1.bf16.msra.mxu0 %v574
          %585 = vmatprep.subr.bf16.mxu0 0
          %586 = vmatpush1.bf16.msra.mxu0 %v573
          %587 = vmatprep.subr.bf16.mxu0 0
          %588 = vmatpush1.bf16.msra.mxu0 %v572
          %589 = vmatprep.subr.bf16.mxu0 0
          %590 = vmatpush1.bf16.msra.mxu0 %v571
          %591 = vmatprep.subr.bf16.mxu0 0
          %592 = vmatpush1.bf16.msra.mxu0 %v570
          %593 = vmatprep.subr.bf16.mxu0 0
          %594 = vmatpush1.bf16.msra.mxu0 %v569
          %595 = vmatprep.subr.bf16.mxu0 0
          %596 = vmatpush1.bf16.msra.mxu0 %v568
          %597 = vmatprep.subr.bf16.mxu0 0
          %598 = vmatpush1.bf16.msra.mxu0 %v567
          %599 = vmatprep.subr.bf16.mxu0 0
          %600 = vmatpush2.bf16.msra.mxu0 0
          %601 = vmatprep.subr.bf16.mxu0 0
          %602 = vmatpush2.bf16.msra.mxu0 0
          %603 = vmatprep.subr.bf16.mxu0 0
          %604 = vmatpush2.bf16.msra.mxu0 0
          %605 = vmatprep.subr.bf16.mxu0 0
          %606 = vmatpush2.bf16.msra.mxu0 0
          %607 = vmatprep.subr.bf16.mxu0 0
          %608 = vmatpush2.bf16.msra.mxu0 0
          %609 = vmatprep.subr.bf16.mxu0 0
          %610 = vmatpush2.bf16.msra.mxu0 0
          %611 = vmatprep.subr.bf16.mxu0 0
          %612 = vmatpush2.bf16.msra.mxu0 0
          %613 = vmatprep.subr.bf16.mxu0 0
          %614 = vmatpush2.bf16.msra.mxu0 0
          %615 = vmatprep.mubr.bf16.mxu0 0
          %616 = vmatmul.mubr.bf16.gmra.mxu0 %v518
          %v617 = vpop.f32.mrf.mxu0
          %v618 = vadd.f32 0.0, %v617
          %v619 = vpop.f32.mrf.mxu0
          %v620 = vpop.f32.mrf.mxu0
          %v621 = vpop.f32.mrf.mxu0
          %622 = vdwg.mxu0
          %v623 = vld [vmem:[%s338] sm:$0xff]
          %v624 = vmul.f32 %v517, %v623
          %v625 = vld [vmem:[%s347] sm:$0xff]
          %v626 = vmul.f32 %v618, %v625
          %v627 = vadd.f32 %v624, %v626
          %v628 = vpack.c.bf16 %v627, %v627
          %629 = vst [vmem:[%s392] sm:$0xf] %v628
        $region68: #{tpu_custom_call.1} parent=39 // pred_fallthru
          _
        %p630 = scmp.ge.s32.totalorder %s34, 3
        %p631 = pnand %p395, %p630
        %p632 = pneg %p631
        // Predicated region
        $region69: #{tpu_custom_call.1} parent=39 // pred_check
          _
        $region70: #{tpu_custom_call.1} parent=39 // pred_check_branch
          %634 = sbr.rel (%p631) target = $region72
        $region71: #{tpu_custom_call.1} parent=39 // pred_region
          %v635 = vld [vmem:[#allocation2] sm:$0xff]
          %v636 = vpack.c.bf16 %v635, %v635
          %637 = vst [vmem:[%s392] sm:$0xf] %v636
        $region72: #{tpu_custom_call.1} parent=39 // pred_fallthru
          _
        %s638 = sand.u32 %s186, 1
        %s639 = scalar_lea.sflag [#allocation5], %s638
        %s640 = sand.u32 %s186, 1
        %s641 = smul.addr %s640, 4
        %s642 = scalar_lea.vmem [#allocation12], %s641
        // Predicated region
        $region73: #{tpu_custom_call.1} parent=39 // pred_check
          %p643 = pneg %p196
        $region74: #{tpu_custom_call.1} parent=39 // pred_check_branch
          %645 = sbr.rel (%p643) target = $region76
        $region75: #{tpu_custom_call.1} parent=39 // pred_region
          %s647 = ssub.s32 64, 64
          %648 = vsyncadd %s639, %s647
          %s649 = smul.addr %s33, 4
          %s650 = sadd.s32 %s34, %s649
          %s651 = smul.addr %s650, 64
          %s652 = scalar_lea.hbm %s5, %s651
          %s654 = sshll.u32 %s642, 4
          %s655 = int_to_ptr.vmem [resolvable:$true] %s654
          %657 = dma.vmem_to_hbm [thread:$0]  %s655, 64, %s652, %s639
        $region76: #{tpu_custom_call.1} parent=39 // pred_fallthru
          _
      $region40: #{tpu_custom_call.1} parent=5 // pred_fallthru
        _
      %p658 = scmp.le.s32.totalorder 2, %s23
      // Predicated region
      $region77: #{tpu_custom_call.1} parent=5 // pred_check
        %p659 = pneg %p658
      $region78: #{tpu_custom_call.1} parent=5 // pred_check_branch
        %661 = sbr.rel (%p659) target = $region80
      $region79: #{tpu_custom_call.1} parent=5 // pred_region
        %s662 = ssub.s32 %s23, 2
        // Predicated region
        $region81: #{tpu_custom_call.1} parent=79 // pred_check
          %p663 = pneg %p202
        $region82: #{tpu_custom_call.1} parent=79 // pred_check_branch
          %665 = sbr.rel (%p663) target = $region84
        $region83: #{tpu_custom_call.1} parent=79 // pred_region
          %s666 = sand.u32 %s187, 1
          %s667 = scalar_lea.sflag [#allocation5], %s666
          %s668 = sand.u32 %s187, 1
          %s669 = smul.addr %s668, 4
          %s670 = scalar_lea.vmem [#allocation12], %s669
          %671 = dma.done %s667, 64
        $region84: #{tpu_custom_call.1} parent=79 // pred_fallthru
          _
      $region80: #{tpu_custom_call.1} parent=5 // pred_fallthru
        _
    $region6: #{tpu_custom_call.1} parent=1 // loop_footer
      %s27 = sadd.s32 1, %s23
    $region7: #{tpu_custom_call.1} parent=1 // loop_footer_branch
      %22 = sbr.rel target = $region3
    $region8: #{tpu_custom_call.1} parent=1 // loop_exit
      _
    %672 = vsyncpa [#allocation4], 1
    %s673 = scalar_lea.sflag [#allocation4], 1
    %674 = vsyncpa %s673, 1
    %675 = vsyncpa [#allocation7], 1
    %s676 = scalar_lea.sflag [#allocation7], 1
    %677 = vsyncpa %s676, 1
    %678 = vsyncpa [#allocation10], 1
    %s679 = scalar_lea.sflag [#allocation10], 1
    %680 = vsyncpa %s679, 1
    %681 = vsyncpa [#allocation5], 1
    %s682 = scalar_lea.sflag [#allocation5], 1
    %683 = vsyncpa %s682, 1

</llo_original>
